<compile_context>
chip_gen: v7x
topology: tpu7x:2x2x1
jax: 0.10.0
libtpu: 0.0.40
codegen_flags: <defaults>
</compile_context>

<pallas_src>
import functools

import jax
import jax.numpy as jnp
from jax.experimental import pallas as pl
from jax.experimental.pallas import tpu as pltpu


def _binary_classifier_kernel(x_ref, w1_ref, b1_ref, w2_ref, b2_ref, o_ref,
                              *, fc2_as_reduction):
    # fc1: (TB, F) @ (F, H) on the MXU; bf16 operands, f32 accumulate.
    # x arrives in f32 (saves an HBM pass in the wrapper); cast here is a cheap
    # VPU op that overlaps with the matmul.
    x_bf16 = x_ref[...].astype(jnp.bfloat16)
    h = jnp.dot(x_bf16, w1_ref[...], preferred_element_type=jnp.float32)
    # Bias + ReLU in f32 on the VPU.
    h = jnp.maximum(h + b1_ref[...], 0.0)
    # Dropout(p=0.3) is identity in eval/inference mode.
    # TODO(synk): training-mode dropout (pltpu.prng_random_bits mask + 1/(1-p)
    # scaling) is not emitted here.
    if fc2_as_reduction:
        # fc2 with output_dim == 1: (TB, H) * (1, H) broadcast-multiply (VPU) +
        # cross-lane sum (XLU).  Avoids feeding a 1-column matmul to the MXU.
        # w2 arrives pre-transposed as (1, H), lane-aligned with h.
        w2_row = w2_ref[...].astype(jnp.float32)
        logits = jnp.sum(h * w2_row, axis=-1, keepdims=True) + b2_ref[...]
    else:
        logits = jnp.dot(h.astype(w2_ref.dtype), w2_ref[...],
                         preferred_element_type=jnp.float32) + b2_ref[...]
    # Sigmoid: exp on the EUP, approximate reciprocal also on the EUP slot.
    o_ref[...] = pl.reciprocal(1.0 + jnp.exp(-logits),
                               approx=True).astype(o_ref.dtype)


def binary_classifier_forward(x, w1, b1, w2, b2, *, block_b=512):
    """x: (B, F); w1: (F, H); b1: (H,); w2: (H, O); b2: (O,) -> (B, O) probs."""
    B, F = x.shape
    H = w1.shape[1]
    O = w2.shape[1]

    # Batch tile: either the whole (small) batch, or a large 8-aligned tile so
    # the (8,128) block rule holds and BlockSpec double-buffers the x stream.
    # NOTE(v7x): re-derive block_b for the 64 MiB VMEM budget if F/H grow large.
    TB = min(block_b, B)
    if TB != B:
        TB = max(8, (TB // 8) * 8)          # keep sublane-aligned partial tiles
    grid = (pl.cdiv(B, TB),)

    # bf16 matmul operands for the (small, VMEM-resident) weights only; x stays
    # f32 in HBM and is cast inside the kernel.  Biases / elementwise stay f32.
    x_f32 = x.astype(jnp.float32)
    w1_bf16 = w1.astype(jnp.bfloat16)
    b1_2d = b1.reshape(1, H).astype(jnp.float32)
    b2_2d = b2.reshape(1, O).astype(jnp.float32)

    fc2_as_reduction = (O == 1)
    if fc2_as_reduction:
        w2_arg = w2.T.astype(jnp.bfloat16)                  # (1, H), lane-aligned
        w2_spec = pl.BlockSpec((1, H), lambda i: (0, 0))
    else:
        w2_arg = w2.astype(jnp.bfloat16)                    # (H, O)
        w2_spec = pl.BlockSpec((H, O), lambda i: (0, 0))

    kernel = functools.partial(_binary_classifier_kernel,
                               fc2_as_reduction=fc2_as_reduction)

    # TODO(synk): for very large B with O == 1, a lane-dense (1, B) output slab
    # would avoid 1-lane masked stores; kept (B, O) to match the module layout
    # (output bytes are ~F x smaller than the x stream, so this is minor).
    return pl.pallas_call(
        kernel,
        out_shape=jax.ShapeDtypeStruct((B, O), jnp.float32),
        grid_spec=pltpu.PrefetchScalarGridSpec(
            num_scalar_prefetch=0,
            grid=grid,
            in_specs=[
                pl.BlockSpec((TB, F), lambda i: (i, 0)),    # x: streams per tile
                pl.BlockSpec((F, H), lambda i: (0, 0)),     # w1: VMEM-resident
                pl.BlockSpec((1, H), lambda i: (0, 0)),     # b1
                w2_spec,                                    # w2 (or w2^T)
                pl.BlockSpec((1, O), lambda i: (0, 0)),     # b2
            ],
            out_specs=pl.BlockSpec((TB, O), lambda i: (i, 0)),
        ),
        compiler_params=pltpu.CompilerParams(
            dimension_semantics=("parallel",),      # batch tiles are independent
            vmem_limit_bytes=32 * 1024 * 1024,      # safe on v5e/v6e/v7x
        ),
    )(x_f32, w1_bf16, b1_2d, w2_arg, b2_2d)


if __name__ == "__main__":
    # Model hyperparameters (synthetic, small).
    batch = 2
    input_features = 32
    hidden_dim = 32
    output_dim = 1

    key = jax.random.PRNGKey(0)
    kx, kw1, kb1, kw2, kb2 = jax.random.split(key, 5)

    x = jax.random.normal(kx, (batch, input_features), dtype=jnp.float32)

    # PyTorch nn.Linear stores weight as (out, in); we pass the (in, out)
    # transpose so the kernel computes x @ W + b.
    bound1 = 1.0 / (input_features ** 0.5)
    w1 = jax.random.uniform(kw1, (input_features, hidden_dim),
                            minval=-bound1, maxval=bound1, dtype=jnp.float32)
    b1 = jax.random.uniform(kb1, (hidden_dim,),
                            minval=-bound1, maxval=bound1, dtype=jnp.float32)

    bound2 = 1.0 / (hidden_dim ** 0.5)
    w2 = jax.random.uniform(kw2, (hidden_dim, output_dim),
                            minval=-bound2, maxval=bound2, dtype=jnp.float32)
    b2 = jax.random.uniform(kb2, (output_dim,),
                            minval=-bound2, maxval=bound2, dtype=jnp.float32)

    out = jax.block_until_ready(binary_classifier_forward(x, w1, b1, w2, b2))

    # Reference matched to the kernel's dtype flow (bf16 matmul operands,
    # f32 accumulate / elementwise) — tight tolerance.
    h_ref = jnp.maximum(
        jnp.dot(x.astype(jnp.bfloat16), w1.astype(jnp.bfloat16),
                preferred_element_type=jnp.float32) + b1, 0.0)
    w2_row_ref = w2[:, 0].astype(jnp.bfloat16).astype(jnp.float32)
    logits_ref = jnp.sum(h_ref * w2_row_ref, axis=-1, keepdims=True) + b2
    ref_bf16 = jax.nn.sigmoid(logits_ref)

    # Full-f32 reference (the original PyTorch math) — looser tolerance for the
    # bf16 operand cast.
    ref_f32 = jax.nn.sigmoid(jnp.maximum(x @ w1 + b1, 0.0) @ w2 + b2)

    assert out.shape == (batch, output_dim)
    assert jnp.allclose(out, ref_bf16, atol=3e-3), (out, ref_bf16)
    assert jnp.allclose(out, ref_f32, atol=2e-2), (out, ref_f32)

    print("KERNEL_OK")
</pallas_src>

<mosaic_0001>
module attributes {stable_mosaic.version = 11 : i64} {
  func.func @_binary_classifier_kernel(%arg0: i32, %arg1: memref<2x32xf32, #tpu.memory_space<vmem>>, %arg2: memref<32x32xbf16, #tpu.memory_space<vmem>>, %arg3: memref<1x32xf32, #tpu.memory_space<vmem>>, %arg4: memref<1x32xbf16, #tpu.memory_space<vmem>>, %arg5: memref<1x1xf32, #tpu.memory_space<vmem>>, %arg6: memref<2x1xf32, #tpu.memory_space<vmem>>) attributes {dimension_semantics = [#tpu.dimension_semantics<parallel>], iteration_bounds = array<i64: 1>, scalar_prefetch = 0 : i64, scratch_operands = 0 : i64, tpu.core_type = #tpu.core_type<tc>, window_params = [{transform_indices = @transform_0, window_bounds = array<i64: 2, 32>}, {pipeline_mode = #tpu.pipeline_mode<synchronous>, transform_indices = @transform_1, window_bounds = array<i64: 32, 32>}, {pipeline_mode = #tpu.pipeline_mode<synchronous>, transform_indices = @transform_2, window_bounds = array<i64: 1, 32>}, {pipeline_mode = #tpu.pipeline_mode<synchronous>, transform_indices = @transform_3, window_bounds = array<i64: 1, 32>}, {pipeline_mode = #tpu.pipeline_mode<synchronous>, transform_indices = @transform_4, window_bounds = array<i64: 1, 1>}, {transform_indices = @transform_5, window_bounds = array<i64: 2, 1>}]} {
    %c0 = arith.constant 0 : index
    %c0_0 = arith.constant 0 : index
    %0 = vector.load %arg1[%c0, %c0_0] : memref<2x32xf32, #tpu.memory_space<vmem>>, vector<2x32xf32>
    %1 = arith.truncf %0 : vector<2x32xf32> to vector<2x32xbf16>
    %c0_1 = arith.constant 0 : index
    %c0_2 = arith.constant 0 : index
    %2 = vector.load %arg2[%c0_1, %c0_2] : memref<32x32xbf16, #tpu.memory_space<vmem>>, vector<32x32xbf16>
    %cst = arith.constant dense<0.000000e+00> : vector<2x32xf32>
    %3 = tpu.matmul %1, %2, %cst {dimension_numbers = #tpu.dot_dimension_numbers<[1], [0], [0], [1], [0, 0, 1, 1], [], []>} : vector<2x32xbf16>, vector<32x32xbf16>, vector<2x32xf32> -> vector<2x32xf32>
    %c0_3 = arith.constant 0 : index
    %c0_4 = arith.constant 0 : index
    %4 = vector.load %arg3[%c0_3, %c0_4] : memref<1x32xf32, #tpu.memory_space<vmem>>, vector<1x32xf32>
    %5 = vector.broadcast %4 : vector<1x32xf32> to vector<2x32xf32>
    %6 = arith.addf %3, %5 : vector<2x32xf32>
    %cst_5 = arith.constant 0.000000e+00 : f32
    %7 = vector.broadcast %cst_5 : f32 to vector<2x32xf32>
    %8 = arith.maximumf %6, %7 : vector<2x32xf32>
    %c0_6 = arith.constant 0 : index
    %c0_7 = arith.constant 0 : index
    %9 = vector.load %arg4[%c0_6, %c0_7] : memref<1x32xbf16, #tpu.memory_space<vmem>>, vector<1x32xbf16>
    %10 = arith.extf %9 : vector<1x32xbf16> to vector<1x32xf32>
    %11 = vector.broadcast %10 : vector<1x32xf32> to vector<2x32xf32>
    %12 = arith.mulf %8, %11 : vector<2x32xf32>
    %cst_8 = arith.constant dense<0.000000e+00> : vector<2xf32>
    %13 = vector.multi_reduction <add>, %12, %cst_8 [1] : vector<2x32xf32> to vector<2xf32>
    %14 = vector.shape_cast %13 : vector<2xf32> to vector<2x1xf32>
    %c0_9 = arith.constant 0 : index
    %c0_10 = arith.constant 0 : index
    %15 = vector.load %arg5[%c0_9, %c0_10] : memref<1x1xf32, #tpu.memory_space<vmem>>, vector<1x1xf32>
    %16 = vector.broadcast %15 : vector<1x1xf32> to vector<2x1xf32>
    %17 = arith.addf %14, %16 : vector<2x1xf32>
    %cst_11 = arith.constant 0.000000e+00 : f32
    %18 = vector.broadcast %cst_11 : f32 to vector<2x1xf32>
    %19 = arith.subf %18, %17 : vector<2x1xf32>
    %20 = math.exp %19 : vector<2x1xf32>
    %cst_12 = arith.constant 1.000000e+00 : f32
    %21 = vector.broadcast %cst_12 : f32 to vector<2x1xf32>
    %22 = arith.addf %21, %20 : vector<2x1xf32>
    %23 = tpu.reciprocal %22 {approx = true} : vector<2x1xf32> -> vector<2x1xf32>
    %c0_13 = arith.constant 0 : index
    %c0_14 = arith.constant 0 : index
    %24 = vector.load %arg6[%c0_13, %c0_14] : memref<2x1xf32, #tpu.memory_space<vmem>>, vector<2x1xf32>
    tpu.vector_store %arg6[%c0_13, %c0_14], %23 {strides = array<i32>} : memref<2x1xf32, #tpu.memory_space<vmem>>, vector<2x1xf32>,
    return
  }
  func.func @transform_0(%arg0: i32) -> (i32, i32) {
    %c0_i32 = arith.constant 0 : i32
    %c0_i32_0 = arith.constant 0 : i32
    return %arg0, %c0_i32 : i32, i32
  }
  func.func @transform_1(%arg0: i32) -> (i32, i32) {
    %c0_i32 = arith.constant 0 : i32
    %c0_i32_0 = arith.constant 0 : i32
    %c0_i32_1 = arith.constant 0 : i32
    return %c0_i32, %c0_i32_0 : i32, i32
  }
  func.func @transform_2(%arg0: i32) -> (i32, i32) {
    %c0_i32 = arith.constant 0 : i32
    %c0_i32_0 = arith.constant 0 : i32
    %c0_i32_1 = arith.constant 0 : i32
    return %c0_i32, %c0_i32_0 : i32, i32
  }
  func.func @transform_3(%arg0: i32) -> (i32, i32) {
    %c0_i32 = arith.constant 0 : i32
    %c0_i32_0 = arith.constant 0 : i32
    %c0_i32_1 = arith.constant 0 : i32
    return %c0_i32, %c0_i32_0 : i32, i32
  }
  func.func @transform_4(%arg0: i32) -> (i32, i32) {
    %c0_i32 = arith.constant 0 : i32
    %c0_i32_0 = arith.constant 0 : i32
    %c0_i32_1 = arith.constant 0 : i32
    return %c0_i32, %c0_i32_0 : i32, i32
  }
  func.func @transform_5(%arg0: i32) -> (i32, i32) {
    %c0_i32 = arith.constant 0 : i32
    %c0_i32_0 = arith.constant 0 : i32
    return %arg0, %c0_i32 : i32, i32
  }
}

</mosaic_0001>

<llo_original>
// kernel: tpu_custom_call.1
$region0: #{tpu_custom_call.1}
  #allocation0 [shape = 'u32[]', space=smem, size = 0x4, offset = 0x4, fixed_abs, tag = 'smem constant byte address 0x4 - core index']
  #allocation1 [shape = 'u32[144,128]{1,0:T(1,128)}', space=vmem, size = 0x12000, scoped, tag = 'internal scratch']
  #allocation2 [shape = 'f32[1,1]{1,0:T(1,128)S(1)}', space=vmem, size = 0x200, scoped, tag = 'scoped memory for tpu_custom_call.1']
  %s0 = inlined_call_operand.vmem [shape: f32[2,32], index: 0, kind: input, shape index: {}]
  %s1 = inlined_call_operand.hbm [shape: bf16[32,32], index: 1, kind: input, shape index: {}]
  %s2 = inlined_call_operand.vmem [shape: f32[1,32], index: 2, kind: input, shape index: {}]
  %s3 = inlined_call_operand.vmem [shape: bf16[1,32], index: 3, kind: input, shape index: {}]
  %s4 = inlined_call_operand.<no memory space> [shape: f32[1,1], index: 4, kind: input, shape index: {}]
  %s5 = inlined_call_operand.vmem [shape: f32[2,1], index: 5, kind: output, shape index: {}]
  %s6 = sld [smem:[#allocation0]]
  $region34: #{tpu_custom_call.1} parent=0
    _
  %s8 = ssub.s32 1, %s6
  %s9 = scalar_select 0, %s8, %s6
  %v10 = vstv %s4
  %11 = vst [vmem:[#allocation2] sm:$0x1] %v10
  $region1: #{tpu_custom_call.1} parent=0
    #allocation3 [shape = 'u8[8192]{0}', space=vmem, size = 0x2000, scoped, tag = 'input window, operand 1, single buffered']
    #allocation4 [shape = 's32[1]{0}', space=sflag, size = 0x4, scoped, tag = 'scoped memory for tpu_custom_call.1']
    %12 = vsyncpa [#allocation4], 0
    // Predicated region
    $region2: #{tpu_custom_call.1} parent=1 // pred_check
      _
    $region3: #{tpu_custom_call.1} parent=1 // pred_check_branch
      %14 = sbr.rel (0) target = $region5
    $region4: #{tpu_custom_call.1} parent=1 // pred_region
      _
    $region5: #{tpu_custom_call.1} parent=1 // pred_fallthru
      _
    // Predicated region
    $region6: #{tpu_custom_call.1} parent=1 // pred_check
      _
    $region7: #{tpu_custom_call.1} parent=1 // pred_check_branch
      %16 = sbr.rel (0) target = $region9
    $region8: #{tpu_custom_call.1} parent=1 // pred_region
      %s18 = ssub.s32 256, 256
      %19 = vsyncadd [#allocation4], %s18
      %s20 = sshll.u32 [#allocation3], 4
      %s21 = int_to_ptr.vmem [resolvable:$true] %s20
      %26 = dma.hbm_to_vmem [thread:$0]  %s1, 256, %s21, [#allocation4], 64, 64, 4
    $region9: #{tpu_custom_call.1} parent=1 // pred_fallthru
      _
    // Predicated region
    $region10: #{tpu_custom_call.1} parent=1 // pred_check
      _
    $region11: #{tpu_custom_call.1} parent=1 // pred_check_branch
      %28 = sbr.rel (0) target = $region13
    $region12: #{tpu_custom_call.1} parent=1 // pred_region
      _
    $region13: #{tpu_custom_call.1} parent=1 // pred_fallthru
      _
    // Predicated region
    $region14: #{tpu_custom_call.1} parent=1 // pred_check
      _
    $region15: #{tpu_custom_call.1} parent=1 // pred_check_branch
      %30 = sbr.rel (0) target = $region17
    $region16: #{tpu_custom_call.1} parent=1 // pred_region
      _
    $region17: #{tpu_custom_call.1} parent=1 // pred_fallthru
      _
    // Predicated region
    $region18: #{tpu_custom_call.1} parent=1 // pred_check
      _
    $region19: #{tpu_custom_call.1} parent=1 // pred_check_branch
      %32 = sbr.rel (0) target = $region21
    $region20: #{tpu_custom_call.1} parent=1 // pred_region
      _
    $region21: #{tpu_custom_call.1} parent=1 // pred_fallthru
      _
    // Predicated region
    $region22: #{tpu_custom_call.1} parent=1 // pred_check
      _
    $region23: #{tpu_custom_call.1} parent=1 // pred_check_branch
      %34 = sbr.rel (0) target = $region25
    $region24: #{tpu_custom_call.1} parent=1 // pred_region
      %35 = dma.done [#allocation4], 256
    $region25: #{tpu_custom_call.1} parent=1 // pred_fallthru
      _
    %v37 = vld [vmem:[%s0] sm:$0x3]
    %v38 = vpack.c.bf16 %v37, %v37
    %v39 = vld [vmem:[#allocation3] sm:$0xf]
    %v40 = vld [vmem:[#allocation3 + $0x4] sm:$0xf]
    %v41 = vld [vmem:[#allocation3 + $0x8] sm:$0xf]
    %v42 = vld [vmem:[#allocation3 + $0xc] sm:$0xf]
    %v43 = vld [vmem:[%s2] sm:$0x1]
    %v45 = vlaneseq
    %v46 = vshrl.u32 %v45, 7
    %v47 = vsub.s32 0, %v46
    %v48 = vrot.slane %v43, %v47
    %v54 = vunpack.c.l.b16 %v39
    %v55 = vunpack.c.l.b16 %v40
    %v56 = vunpack.c.l.b16 %v41
    %v57 = vunpack.c.l.b16 %v42
    %v58 = vpack.c.b16 %v55, %v54
    %v59 = vpack.c.b16 %v57, %v56
    %vm62 = vcmask 261120
    %v64 = vsel %vm62, %v38, 0
    %66 = vmatprep.subr.bf16.mxu0 0
    %67 = vmatpush1.bf16.msra.mxu0 %v58
    %68 = vmatprep.subr.bf16.mxu0 0
    %69 = vmatpush1.bf16.msra.mxu0 %v59
    %70 = vmatprep.subr.bf16.mxu0 0
    %71 = vmatpush1.bf16.msra.mxu0 0
    %72 = vmatprep.subr.bf16.mxu0 0
    %73 = vmatpush1.bf16.msra.mxu0 0
    %74 = vmatprep.subr.bf16.mxu0 0
    %75 = vmatpush1.bf16.msra.mxu0 0
    %76 = vmatprep.subr.bf16.mxu0 0
    %77 = vmatpush1.bf16.msra.mxu0 0
    %78 = vmatprep.subr.bf16.mxu0 0
    %79 = vmatpush1.bf16.msra.mxu0 0
    %80 = vmatprep.subr.bf16.mxu0 0
    %81 = vmatpush1.bf16.msra.mxu0 0
    %82 = vmatprep.subr.bf16.mxu0 0
    %83 = vmatpush1.bf16.msra.mxu0 0
    %84 = vmatprep.subr.bf16.mxu0 0
    %85 = vmatpush1.bf16.msra.mxu0 0
    %86 = vmatprep.subr.bf16.mxu0 0
    %87 = vmatpush1.bf16.msra.mxu0 0
    %88 = vmatprep.subr.bf16.mxu0 0
    %89 = vmatpush1.bf16.msra.mxu0 0
    %90 = vmatprep.subr.bf16.mxu0 0
    %91 = vmatpush1.bf16.msra.mxu0 0
    %92 = vmatprep.subr.bf16.mxu0 0
    %93 = vmatpush1.bf16.msra.mxu0 0
    %94 = vmatprep.subr.bf16.mxu0 0
    %95 = vmatpush1.bf16.msra.mxu0 0
    %96 = vmatprep.subr.bf16.mxu0 0
    %97 = vmatpush1.bf16.msra.mxu0 0
    %98 = vmatprep.mubr.bf16.mxu0 0
    %99 = vmatmul.mubr.bf16.gmra.mrb[0].mxu0 %v64
    %v100 = vpop.f32.mrb[0].mxu0
    %v101 = vadd.f32 %v48, %v100
    %v102 = vpop.f32.mrb[0].mxu0
    %v103 = vpop.f32.mrb[0].mxu0
    %v104 = vpop.f32.mrb[0].mxu0
    %105 = vdwg.mxu0
    %v106 = vmax.f32 %v101, 0.0
    %v107 = vld [vmem:[%s3] sm:$0x1]
    %v108 = vunpack.c.l.bf16 %v107
    %v109 = vlaneseq
    %v110 = vshrl.u32 %v109, 7
    %v111 = vsub.s32 0, %v110
    %v112 = vrot.slane %v108, %v111
    %v113 = vmul.f32 %v106, %v112
    %vm114 = vcmask 254976
    %v115 = vsel %vm114, %v113, 0.0
    %116 = vadd.xlane.f32.xlu0 %v115
    %v117 = vpop.xlane.xlu0 %116
    %v118 = vld [vmem:[#allocation2] sm:$0x1]
    %v120 = vlaneseq
    %v121 = vshrl.u32 %v120, 7
    %v122 = vsub.s32 0, %v121
    %v123 = vrot.slane %v118, %v122
    %v125 = vadd.f32 %v117, %v123
    %v126 = vsub.f32 0.0, %v125
    %v127 = vmul.f32 %v126, 1.442695
    %v128 = vpow.pop %v127
    %v129 = vadd.f32 %v128, 1.0
    %v130 = vrcp.pop %v129
    %vm131 = vcmask 1024
    %132 = vst.msk [vmem:[%s5] sm:$0x3] %vm131, %v130
    // Predicated region
    $region26: #{tpu_custom_call.1} parent=1 // pred_check
      _
    $region27: #{tpu_custom_call.1} parent=1 // pred_check_branch
      %134 = sbr.rel (0) target = $region29
    $region28: #{tpu_custom_call.1} parent=1 // pred_region
      _
    $region29: #{tpu_custom_call.1} parent=1 // pred_fallthru
      _
    // Predicated region
    $region30: #{tpu_custom_call.1} parent=1 // pred_check
      _
    $region31: #{tpu_custom_call.1} parent=1 // pred_check_branch
      %136 = sbr.rel (0) target = $region33
    $region32: #{tpu_custom_call.1} parent=1 // pred_region
      _
    $region33: #{tpu_custom_call.1} parent=1 // pred_fallthru
      _
    %137 = vsyncpa [#allocation4], 1

</llo_original>
